<compile_context>
chip_gen: v7x
topology: tpu7x:2x2x1
jax: 0.10.0
libtpu: 0.0.40
codegen_flags: <defaults>
</compile_context>

<pallas_src>
import jax
import jax.numpy as jnp
from jax import lax
from jax.experimental import pallas as pl
from jax.experimental.pallas import tpu as pltpu

_NSLOTS = 8                      # ring depth: max in-flight zeroing DMAs per core
_NUM_CORES = 2                   # v7x has 2 TCs; extra grid steps are free on v5e/v6e
_DMA_MIN_CHUNK_BYTES = 2048      # below this, per-row DMAs are descriptor-bound
_STREAM_MAX_BYTES = 4 << 20      # tensors smaller than this just stream


# --------------------------------------------------------------------------
# Path 1: in-place DMA zeroing of dropped token rows.
# --------------------------------------------------------------------------
def _pathway_drop_dma_kernel(nd_ref, idx_ref, x_ref, out_ref, zero_buf, sems):
    """Zero out_ref[:, idx_ref[j], :] for this core's share of dropped tokens.

    nd_ref   : SMEM (1,) int32   number of dropped tokens
    idx_ref  : SMEM (N,) int32   compacted dropped-token indices (padded)
    x_ref    : HBM  (B, N, D)    unused (aliased to out_ref: kept rows stay)
    out_ref  : HBM  (B, N, D)    aliased with x_ref -> in-place update
    zero_buf : VMEM (B, 1, D)    constant zeros, DMA source
    sems     : DMA semaphores (_NSLOTS,) (per-core)
    """
    del x_ref  # present only so its buffer can be aliased into the output

    zero_buf[...] = jnp.zeros_like(zero_buf)

    n_d = nd_ref[0]
    core = pl.program_id(0)
    n_cores = pl.num_programs(0)
    per_core = (n_d + n_cores - 1) // n_cores
    start = core * per_core
    end = jnp.minimum(start + per_core, n_d)
    count = jnp.maximum(end - start, 0)

    def _desc(token, slot):
        # Every copy has identical shape/dtype, so a descriptor aimed at token 0
        # is a valid wait handle for any issued copy on that semaphore slot.
        return pltpu.make_async_copy(
            zero_buf, out_ref.at[:, pl.ds(token, 1), :], sems.at[slot]
        )

    def _issue(k, carry):
        slot = k & (_NSLOTS - 1)

        # Reusing a slot: wait for the copy issued _NSLOTS issues ago.
        @pl.when(k >= _NSLOTS)
        def _():
            _desc(0, slot).wait()

        tok = idx_ref[start + k]
        _desc(tok, slot).start()
        return carry

    lax.fori_loop(0, count, _issue, 0)

    # Drain: every slot s < min(count, _NSLOTS) still has one copy in flight.
    @pl.loop(0, _NSLOTS)
    def _(s):
        @pl.when(s < count)
        def _():
            _desc(0, s).wait()


def _pathway_drop_dma(x, drop):
    B, N, D = x.shape
    drop_i = drop.astype(jnp.int32)
    num_dropped = jnp.sum(drop_i, dtype=jnp.int32).reshape(1)
    # Dense dropped-index list, padded with 0 (never read past num_dropped).
    idx = jnp.nonzero(drop_i, size=N, fill_value=0)[0].astype(jnp.int32)

    return pl.pallas_call(
        _pathway_drop_dma_kernel,
        out_shape=jax.ShapeDtypeStruct((B, N, D), x.dtype),
        grid=(_NUM_CORES,),
        in_specs=[
            pl.BlockSpec(memory_space=pltpu.MemorySpace.SMEM),  # num_dropped
            pl.BlockSpec(memory_space=pltpu.MemorySpace.SMEM),  # dropped indices
            pl.BlockSpec(memory_space=pl.ANY),                  # x stays in HBM
        ],
        out_specs=pl.BlockSpec(memory_space=pl.ANY),            # written via DMA only
        scratch_shapes=[
            pltpu.VMEM((B, 1, D), x.dtype),       # zero tile (DMA source)
            pltpu.SemaphoreType.DMA((_NSLOTS,)),  # per-core DMA completion ring
        ],
        input_output_aliases={2: 0},  # x -> out: in-place, kept rows untouched
        compiler_params=pltpu.CompilerParams(
            dimension_semantics=("parallel",),    # v7x: split index list across TCs
            has_side_effects=True,
        ),
    )(num_dropped, idx, x)


# --------------------------------------------------------------------------
# Path 2: streaming masked multiply (small per-token chunks / small tensors).
# --------------------------------------------------------------------------
def _pathway_drop_stream_kernel(keep_ref, x_ref, o_ref):
    # keep_ref: (tn, 1); x_ref/o_ref: (tb, tn, D). Lane axis = D (dense stores).
    o_ref[...] = x_ref[...] * keep_ref[...][None, :, :]


def _stream_tiles(B, N, D, itemsize):
    """Pick (tb, tn) so each x block is ~1 MiB and tn is a multiple of 8 or N."""
    target = 1 << 20
    if B * N * D * itemsize <= 2 * target:
        return B, N                                  # single block
    row = max(1, D * itemsize)                       # one (batch, token) row
    rows = max(1, target // row)                     # rows per block budget
    if rows >= B * 8:
        tb = B
        tn = min(N, (rows // B) // 8 * 8)
        if tn >= N:
            tn = N
    else:
        tn = N if N < 8 else 8
        tb = max(1, min(B, rows // max(1, tn)))
    return int(tb), int(tn)


def _pathway_drop_stream(x, drop):
    B, N, D = x.shape
    itemsize = jnp.dtype(x.dtype).itemsize
    keep = jnp.logical_not(drop).astype(x.dtype).reshape(N, 1)
    tb, tn = _stream_tiles(B, N, D, itemsize)

    return pl.pallas_call(
        _pathway_drop_stream_kernel,
        out_shape=jax.ShapeDtypeStruct((B, N, D), x.dtype),
        grid=(pl.cdiv(B, tb), pl.cdiv(N, tn)),
        in_specs=[
            pl.BlockSpec((tn, 1), lambda b, t: (t, 0)),         # keep mask
            pl.BlockSpec((tb, tn, D), lambda b, t: (b, t, 0)),  # x
        ],
        out_specs=pl.BlockSpec((tb, tn, D), lambda b, t: (b, t, 0)),
        compiler_params=pltpu.CompilerParams(
            dimension_semantics=("parallel", "parallel"),
        ),
    )(keep, x)


# --------------------------------------------------------------------------
# Functional PathwayDrop.forward.
# --------------------------------------------------------------------------
def pathway_drop(x, key, p=0.5, training=True, path=None):
    """PathwayDrop forward pass.

    x: (B, N, D). In training, each token column is zeroed with prob p.
    path: None (auto) | "dma" | "stream".
    The "dma" path aliases x's buffer into the output -- callers should donate
    x at the jit boundary (donate_argnums) and must not reuse x afterwards.
    """
    if not training:
        return x

    B, N, D = x.shape
    # np.random.binomial(1, p) == 1  ->  drop the token (probability p).
    drop = jax.random.bernoulli(key, p, (N,))

    if path is None:
        itemsize = jnp.dtype(x.dtype).itemsize
        chunk_bytes = D * itemsize
        total_bytes = B * N * D * itemsize
        path = (
            "stream"
            if (chunk_bytes < _DMA_MIN_CHUNK_BYTES or total_bytes <= _STREAM_MAX_BYTES)
            else "dma"
        )

    if path == "stream":
        return _pathway_drop_stream(x, drop)
    return _pathway_drop_dma(x, drop)


if __name__ == "__main__":
    key = jax.random.PRNGKey(0)
    kx, kmask, kx2, kmask2 = jax.random.split(key, 4)

    # ---- small shape (module-typical): streaming masked-multiply path ----
    B, N, D = 2, 8, 32
    x = jax.random.normal(kx, (B, N, D), dtype=jnp.float32)
    drop = jax.random.bernoulli(kmask, 0.5, (N,))
    ref = jax.block_until_ready(jnp.where(drop[None, :, None], 0.0, x))

    out_eval = jax.block_until_ready(pathway_drop(x, kmask, p=0.5, training=False))
    assert jnp.array_equal(out_eval, x)

    out = jax.block_until_ready(pathway_drop(x, kmask, p=0.5, training=True))
    assert out.shape == (B, N, D)
    assert jnp.array_equal(out, ref), "PathwayDrop streaming path mismatch"

    # ---- larger hidden dim: in-place DMA zeroing path (forced) ----
    B2, N2, D2 = 2, 16, 512  # D2 * 4 bytes = 2 KiB per contiguous row
    x2 = jax.random.normal(kx2, (B2, N2, D2), dtype=jnp.float32)
    drop2 = jax.random.bernoulli(kmask2, 0.5, (N2,))
    # Reference computed & materialized BEFORE the kernel (kernel aliases x2).
    ref2 = jax.block_until_ready(jnp.where(drop2[None, :, None], 0.0, x2))

    out2 = jax.block_until_ready(
        pathway_drop(x2, kmask2, p=0.5, training=True, path="dma")
    )
    assert out2.shape == (B2, N2, D2)
    assert jnp.array_equal(out2, ref2), "PathwayDrop DMA path mismatch"

    print("KERNEL_OK")
</pallas_src>

<mosaic_0001>
module attributes {stable_mosaic.version = 11 : i64} {
  func.func @_pathway_drop_stream_kernel(%arg0: i32, %arg1: i32, %arg2: memref<8x1xf32, #tpu.memory_space<vmem>>, %arg3: memref<2x8x32xf32, #tpu.memory_space<vmem>>, %arg4: memref<2x8x32xf32, #tpu.memory_space<vmem>>) attributes {dimension_semantics = [#tpu.dimension_semantics<parallel>, #tpu.dimension_semantics<parallel>], iteration_bounds = array<i64: 1, 1>, scalar_prefetch = 0 : i64, scratch_operands = 0 : i64, tpu.core_type = #tpu.core_type<tc>, window_params = [{transform_indices = @transform_0, window_bounds = array<i64: 8, 1>}, {transform_indices = @transform_1, window_bounds = array<i64: 2, 8, 32>}, {transform_indices = @transform_2, window_bounds = array<i64: 2, 8, 32>}]} {
    %c0 = arith.constant 0 : index
    %c0_0 = arith.constant 0 : index
    %c0_1 = arith.constant 0 : index
    %0 = vector.load %arg3[%c0, %c0_0, %c0_1] : memref<2x8x32xf32, #tpu.memory_space<vmem>>, vector<2x8x32xf32>
    %c0_2 = arith.constant 0 : index
    %c0_3 = arith.constant 0 : index
    %1 = vector.load %arg2[%c0_2, %c0_3] : memref<8x1xf32, #tpu.memory_space<vmem>>, vector<8x1xf32>
    %2 = vector.shape_cast %1 : vector<8x1xf32> to vector<1x8x1xf32>
    %3 = vector.broadcast %2 : vector<1x8x1xf32> to vector<2x8x32xf32>
    %4 = arith.mulf %0, %3 : vector<2x8x32xf32>
    %c0_4 = arith.constant 0 : index
    %c0_5 = arith.constant 0 : index
    %c0_6 = arith.constant 0 : index
    %5 = vector.load %arg4[%c0_4, %c0_5, %c0_6] : memref<2x8x32xf32, #tpu.memory_space<vmem>>, vector<2x8x32xf32>
    tpu.vector_store %arg4[%c0_4, %c0_5, %c0_6], %4 {strides = array<i32>} : memref<2x8x32xf32, #tpu.memory_space<vmem>>, vector<2x8x32xf32>,
    return
  }
  func.func @transform_0(%arg0: i32, %arg1: i32) -> (i32, i32) {
    %c0_i32 = arith.constant 0 : i32
    %c0_i32_0 = arith.constant 0 : i32
    return %arg1, %c0_i32 : i32, i32
  }
  func.func @transform_1(%arg0: i32, %arg1: i32) -> (i32, i32, i32) {
    %c0_i32 = arith.constant 0 : i32
    %c0_i32_0 = arith.constant 0 : i32
    return %arg0, %arg1, %c0_i32 : i32, i32, i32
  }
  func.func @transform_2(%arg0: i32, %arg1: i32) -> (i32, i32, i32) {
    %c0_i32 = arith.constant 0 : i32
    %c0_i32_0 = arith.constant 0 : i32
    return %arg0, %arg1, %c0_i32 : i32, i32, i32
  }
}

</mosaic_0001>

<llo_original>
// kernel: tpu_custom_call.1
$region0: #{tpu_custom_call.1}
  #allocation0 [shape = 'u32[]', space=smem, size = 0x4, offset = 0x4, fixed_abs, tag = 'smem constant byte address 0x4 - core index']
  #allocation1 [shape = 'u32[144,128]{1,0:T(1,128)}', space=vmem, size = 0x12000, scoped, tag = 'internal scratch']
  %s0 = inlined_call_operand.vmem [shape: f32[8,1], index: 0, kind: input, shape index: {}]
  %s1 = inlined_call_operand.hbm [shape: f32[2,8,32], index: 1, kind: input, shape index: {}]
  %s2 = inlined_call_operand.hbm [shape: f32[2,8,32], index: 2, kind: output, shape index: {}]
  %s3 = sld [smem:[#allocation0]]
  $region22: #{tpu_custom_call.1} parent=0
    _
  %s5 = ssub.s32 1, %s3
  %s6 = scalar_select 0, %s5, %s3
  $region1: #{tpu_custom_call.1} parent=0
    #allocation2 [shape = 'u8[8192]{0}', space=vmem, size = 0x2000, scoped, tag = 'input window, operand 1, single buffered']
    #allocation3 [shape = 's32[1]{0}', space=sflag, size = 0x4, scoped, tag = 'scoped memory for tpu_custom_call.1']
    #allocation4 [shape = 's32[1]{0}', space=sflag, size = 0x4, scoped, tag = 'scoped memory for tpu_custom_call.1']
    #allocation5 [shape = 'u8[8192]{0}', space=vmem, size = 0x2000, scoped, tag = 'output window, operand 0, single buffered']
    %7 = vsyncpa [#allocation3], 0
    %8 = vsyncpa [#allocation4], 0
    // Predicated region
    $region2: #{tpu_custom_call.1} parent=1 // pred_check
      _
    $region3: #{tpu_custom_call.1} parent=1 // pred_check_branch
      %10 = sbr.rel (0) target = $region5
    $region4: #{tpu_custom_call.1} parent=1 // pred_region
      _
    $region5: #{tpu_custom_call.1} parent=1 // pred_fallthru
      _
    // Predicated region
    $region6: #{tpu_custom_call.1} parent=1 // pred_check
      _
    $region7: #{tpu_custom_call.1} parent=1 // pred_check_branch
      %12 = sbr.rel (0) target = $region9
    $region8: #{tpu_custom_call.1} parent=1 // pred_region
      %s14 = ssub.s32 256, 256
      %15 = vsyncadd [#allocation3], %s14
      %s16 = sshll.u32 [#allocation2], 4
      %s17 = int_to_ptr.vmem [resolvable:$true] %s16
      %22 = dma.hbm_to_vmem [thread:$0]  %s1, 256, %s17, [#allocation3], 128, 128, 8
    $region9: #{tpu_custom_call.1} parent=1 // pred_fallthru
      _
    // Predicated region
    $region10: #{tpu_custom_call.1} parent=1 // pred_check
      _
    $region11: #{tpu_custom_call.1} parent=1 // pred_check_branch
      %24 = sbr.rel (0) target = $region13
    $region12: #{tpu_custom_call.1} parent=1 // pred_region
      %25 = dma.done [#allocation3], 256
    $region13: #{tpu_custom_call.1} parent=1 // pred_fallthru
      _
    %v26 = vld [vmem:[#allocation2] sm:$0xff]
    %v27 = vld [vmem:[#allocation2 + $0x8] sm:$0xff]
    %v28 = vld [vmem:[%s0] sm:$0xff]
    %30 = vset.pattern.permute.xlu0 0
    %31 = vperm.xlu0 %30, %v28
    %v32 = vpop.permute.xlu0 %31
    %v34 = vmul.f32 %v26, %v32
    %v35 = vmul.f32 %v27, %v32
    %vm36 = vcmask 261120
    %37 = vst.msk [vmem:[#allocation5] sm:$0xff] %vm36, %v34
    %38 = vst.msk [vmem:[#allocation5 + $0x8] sm:$0xff] %vm36, %v35
    // Predicated region
    $region14: #{tpu_custom_call.1} parent=1 // pred_check
      _
    $region15: #{tpu_custom_call.1} parent=1 // pred_check_branch
      %40 = sbr.rel (0) target = $region17
    $region16: #{tpu_custom_call.1} parent=1 // pred_region
      %s42 = ssub.s32 256, 256
      %43 = vsyncadd [#allocation4], %s42
      %s44 = sshll.u32 [#allocation5], 4
      %s45 = int_to_ptr.vmem [resolvable:$true] %s44
      %50 = dma.vmem_to_hbm [thread:$0]  %s45, 256, %s2, [#allocation4], 128, 128, 8
    $region17: #{tpu_custom_call.1} parent=1 // pred_fallthru
      _
    // Predicated region
    $region18: #{tpu_custom_call.1} parent=1 // pred_check
      _
    $region19: #{tpu_custom_call.1} parent=1 // pred_check_branch
      %52 = sbr.rel (0) target = $region21
    $region20: #{tpu_custom_call.1} parent=1 // pred_region
      %53 = dma.done [#allocation4], 256
    $region21: #{tpu_custom_call.1} parent=1 // pred_fallthru
      _
    %54 = vsyncpa [#allocation3], 1
    %55 = vsyncpa [#allocation4], 1

</llo_original>
